<compile_context>
chip_gen: v6e
topology: v6e:2x2x1
jax: 0.10.0
libtpu: 0.0.40
codegen_flags: <defaults>
</compile_context>

<pallas_src>
import numpy as np
import jax
import jax.numpy as jnp
from jax.experimental import pallas as pl
from jax.experimental.pallas import tpu as pltpu


def _cat_dup_kernel(x_ref, o_ref):
    # x_ref: (1, 1, T) lane-dense tile of the flattened input
    # o_ref: (1, 2, T) lane-dense tile of the flattened output (two copies)
    o_ref[...] = jnp.broadcast_to(x_ref[...], o_ref.shape)


def _choose_flat_tile(per_batch, itemsize, tile_cap_bytes=2 * 1024 * 1024):
    """Largest lane-dense (multiple-of-128) tile along the flat axis that
    divides per_batch and keeps the double-buffered in/out blocks well inside
    the scoped-VMEM limits of all TPU generations (v5e 16 MiB .. v7x)."""
    cap_elems = max(128, tile_cap_bytes // itemsize)
    if per_batch <= cap_elems:
        return per_batch
    t = (cap_elems // 128) * 128
    while t >= 128:
        if per_batch % t == 0:
            return t
        t -= 128
    # TODO(synk): no 128-multiple divisor of per_batch fits the budget; fall
    # back to one full-row block (may exceed scoped VMEM for huge inputs).
    return per_batch


def cat_views(x):
    """z = concat([x.reshape(B,-1,32,25), x.reshape(B,-1,32,25)], axis=1)."""
    B = x.shape[0]
    per_batch = int(np.prod(x.shape[1:]))
    assert per_batch % (32 * 25) == 0, "input not viewable as (B, -1, 32, 25)"
    c2 = per_batch // (32 * 25)

    itemsize = jnp.dtype(x.dtype).itemsize
    tile = _choose_flat_tile(per_batch, itemsize)
    n_tiles = per_batch // tile

    # Lane-dense flat view: the fast (lane) axis is the whole per-batch row
    # (or a 128-multiple chunk of it) instead of width 25.
    xf = x.reshape(B, 1, per_batch)

    zf = pl.pallas_call(
        _cat_dup_kernel,
        out_shape=jax.ShapeDtypeStruct((B, 2, per_batch), x.dtype),
        grid=(B, n_tiles),
        # Last two block dims are either full array dims or 128-multiples.
        in_specs=[pl.BlockSpec((1, 1, tile), lambda b, t: (b, 0, t))],
        out_specs=pl.BlockSpec((1, 2, tile), lambda b, t: (b, 0, t)),
        compiler_params=pltpu.CompilerParams(
            dimension_semantics=("parallel", "parallel")),
        cost_estimate=pl.CostEstimate(
            flops=0,
            transcendentals=0,
            bytes_accessed=3 * B * per_batch * itemsize),  # read N, write 2N
    )(xf)

    # Free, contiguous row-major reshape back to the cat layout.
    return zf.reshape(B, 2 * c2, 32, 25)


if __name__ == "__main__":
    key = jax.random.PRNGKey(0)
    # B=2, C=4, H=16, W=25 -> per-batch 1600 elements -> C2 = 2
    x = jax.random.normal(key, (2, 4, 16, 25), dtype=jnp.float32)

    z = cat_views(x)
    z = jax.block_until_ready(z)

    # pure-JAX reference
    B = x.shape[0]
    xv = x.reshape(B, -1, 32, 25)
    z_ref = jnp.concatenate([xv, xv], axis=1)

    assert z.shape == z_ref.shape, (z.shape, z_ref.shape)
    np.testing.assert_allclose(np.asarray(z), np.asarray(z_ref), rtol=0, atol=0)
    print("KERNEL_OK")
</pallas_src>

<mosaic_0001>
module attributes {stable_mosaic.version = 11 : i64} {
  func.func @_cat_dup_kernel(%arg0: i32, %arg1: i32, %arg2: memref<1x1x1600xf32, #tpu.memory_space<vmem>>, %arg3: memref<1x2x1600xf32, #tpu.memory_space<vmem>>) attributes {dimension_semantics = [#tpu.dimension_semantics<parallel>, #tpu.dimension_semantics<parallel>], iteration_bounds = array<i64: 2, 1>, scalar_prefetch = 0 : i64, scratch_operands = 0 : i64, tpu.core_type = #tpu.core_type<tc>, window_params = [{transform_indices = @transform_0, window_bounds = array<i64: 1, 1, 1600>}, {transform_indices = @transform_1, window_bounds = array<i64: 1, 2, 1600>}]} {
    %c0 = arith.constant 0 : index
    %c0_0 = arith.constant 0 : index
    %c0_1 = arith.constant 0 : index
    %0 = vector.load %arg2[%c0, %c0_0, %c0_1] : memref<1x1x1600xf32, #tpu.memory_space<vmem>>, vector<1x1x1600xf32>
    %1 = vector.shape_cast %0 : vector<1x1x1600xf32> to vector<1x1x1600xf32>
    %2 = vector.broadcast %1 : vector<1x1x1600xf32> to vector<1x2x1600xf32>
    %c0_2 = arith.constant 0 : index
    %c0_3 = arith.constant 0 : index
    %c0_4 = arith.constant 0 : index
    %3 = vector.load %arg3[%c0_2, %c0_3, %c0_4] : memref<1x2x1600xf32, #tpu.memory_space<vmem>>, vector<1x2x1600xf32>
    tpu.vector_store %arg3[%c0_2, %c0_3, %c0_4], %2 {strides = array<i32>} : memref<1x2x1600xf32, #tpu.memory_space<vmem>>, vector<1x2x1600xf32>,
    return
  }
  func.func @transform_0(%arg0: i32, %arg1: i32) -> (i32, i32, i32) {
    %c0_i32 = arith.constant 0 : i32
    %c0_i32_0 = arith.constant 0 : i32
    return %arg0, %c0_i32, %arg1 : i32, i32, i32
  }
  func.func @transform_1(%arg0: i32, %arg1: i32) -> (i32, i32, i32) {
    %c0_i32 = arith.constant 0 : i32
    %c0_i32_0 = arith.constant 0 : i32
    return %arg0, %c0_i32, %arg1 : i32, i32, i32
  }
}

</mosaic_0001>

<llo_original>
// kernel: tpu_custom_call.1
$region0: #{tpu_custom_call.1}
  #allocation0 [shape = 'u32[]', space=smem, size = 0x4, offset = 0x4, fixed_abs, tag = 'smem constant byte address 0x4 - core index']
  #allocation1 [shape = 'u32[144,128]{1,0:T(1,128)}', space=vmem, size = 0x12000, scoped, tag = 'internal scratch']
  %s0 = inlined_call_operand.hbm [shape: f32[2,1,1600], index: 0, kind: input, shape index: {}]
  %s1 = inlined_call_operand.hbm [shape: f32[2,2,1600], index: 1, kind: output, shape index: {}]
  %s2 = sld [smem:[#allocation0]]
  $region41: #{tpu_custom_call.1} parent=0
    _
  %s4 = ssub.s32 1, %s2
  %s5 = scalar_select 0, %s4, %s2
  $region1: #{tpu_custom_call.1} parent=0
    #allocation2 [shape = 'u8[13312]{0}', space=vmem, size = 0x3400, scoped, tag = 'input window, operand 0']
    #allocation3 [shape = 's32[2]{0}', space=sflag, size = 0x8, scoped, tag = 'scoped memory for tpu_custom_call.1']
    #allocation4 [shape = 's32[2]{0}', space=sflag, size = 0x8, scoped, tag = 'scoped memory for tpu_custom_call.1']
    #allocation5 [shape = 'u8[26624]{0}', space=vmem, size = 0x6800, scoped, tag = 'output window, operand 0']
    %6 = vsyncpa [#allocation3], 0
    %s7 = scalar_lea.sflag [#allocation3], 1
    %8 = vsyncpa %s7, 0
    %9 = vsyncpa [#allocation4], 0
    %s10 = scalar_lea.sflag [#allocation4], 1
    %11 = vsyncpa %s10, 0
    loop: start=0, step=1, limit=4
    $region2: #{tpu_custom_call.1} parent=1 // loop_pre_header
      _
    $region3: #{tpu_custom_call.1} parent=1 // loop_header
      %s13 = sphi 0, %s17
      %p14 = scmp.ge.s32.totalorder %s13, 4
      %s20 = sphi 0, %s32
      %s21 = sphi 0, %s28
      %s22 = sphi 0, %s20
      %s23 = sphi 0, %s21
      %s24 = sphi 0, %s22
      %s25 = sphi 0, %s23
      %s37 = sphi 0, %s39
      %s40 = sphi 0, %s37
      %s41 = sphi 0, %s40
      %s57 = sphi 0, %s41
      %s65 = sphi 0, %s67
      %s68 = sphi 0, %s65
      %s69 = sphi 0, %s68
      %s85 = sphi 0, %s69
    $region4: #{tpu_custom_call.1} parent=1 // loop_header_branch
      %16 = sbr.rel (%p14) target = $region8
    $region5: #{tpu_custom_call.1} parent=1 // loop_body
      %s18 = ssub.s32 %s13, 1
      %s19 = ssub.s32 %s13, 2
      %s26 = sadd.s32 1, %s21
      %p27 = scmp.ge.s32.totalorder %s26, 1
      %s28 = scalar_select %p27, 0, %s26
      %s29 = sadd.s32 1, %s20
      %s30 = scalar_select %p27, %s29, %s20
      %p31 = scmp.ge.s32.totalorder %s30, 2
      %s32 = scalar_select %p31, 0, %s30
      %s33 = ssub.s32 %s20, %s32
      %s34 = ssub.s32 %s21, %s28
      %s35 = sor.u32 %s33, %s34
      %p36 = scmp.eq.s32.totalorder %s35, 0
      %s38 = sadd.s32 %s37, 1
      %s39 = scalar_select %p36, %s37, %s38
      %p42 = pneg %p36
      %p43 = scmp.eq.s32.totalorder %s13, 1
      %p44 = por %p42, %p43
      %p45 = scmp.ne.s32.totalorder %s37, %s40
      %p46 = scmp.eq.s32.totalorder %s13, 0
      %p47 = por %p45, %p46
      %p48 = scmp.ne.s32.totalorder %s37, %s40
      %p49 = scmp.eq.s32.totalorder %s18, 1
      %p50 = por %p48, %p49
      %p51 = scmp.ne.s32.totalorder %s40, %s41
      %p52 = scmp.eq.s32.totalorder %s18, 0
      %p53 = por %p51, %p52
      %p54 = scmp.ne.s32.totalorder %s40, %s41
      %p55 = scmp.eq.s32.totalorder %s19, 1
      %p56 = por %p54, %p55
      %p58 = scmp.ne.s32.totalorder %s41, %s57
      %p59 = scmp.eq.s32.totalorder %s19, 0
      %p60 = por %p58, %p59
      %s61 = ssub.s32 %s20, %s32
      %s62 = ssub.s32 %s21, %s28
      %s63 = sor.u32 %s61, %s62
      %p64 = scmp.eq.s32.totalorder %s63, 0
      %s66 = sadd.s32 %s65, 1
      %s67 = scalar_select %p64, %s65, %s66
      %p70 = pneg %p64
      %p71 = scmp.eq.s32.totalorder %s13, 1
      %p72 = por %p70, %p71
      %p73 = scmp.ne.s32.totalorder %s65, %s68
      %p74 = scmp.eq.s32.totalorder %s13, 0
      %p75 = por %p73, %p74
      %p76 = scmp.ne.s32.totalorder %s65, %s68
      %p77 = scmp.eq.s32.totalorder %s18, 1
      %p78 = por %p76, %p77
      %p79 = scmp.ne.s32.totalorder %s68, %s69
      %p80 = scmp.eq.s32.totalorder %s18, 0
      %p81 = por %p79, %p80
      %p82 = scmp.ne.s32.totalorder %s68, %s69
      %p83 = scmp.eq.s32.totalorder %s19, 1
      %p84 = por %p82, %p83
      %p86 = scmp.ne.s32.totalorder %s69, %s85
      %p87 = scmp.eq.s32.totalorder %s19, 0
      %p88 = por %p86, %p87
      %p89 = scmp.le.s32.totalorder 1, %s13
      %p90 = scmp.lt.s32.totalorder %s13, 3
      %p91 = pnand %p89, %p90
      %p92 = pneg %p91
      // Predicated region
      $region9: #{tpu_custom_call.1} parent=5 // pred_check
        _
      $region10: #{tpu_custom_call.1} parent=5 // pred_check_branch
        %94 = sbr.rel (%p91) target = $region12
      $region11: #{tpu_custom_call.1} parent=5 // pred_region
        %s95 = ssub.s32 %s13, 1
      $region12: #{tpu_custom_call.1} parent=5 // pred_fallthru
        _
      %p96 = scmp.lt.s32.totalorder %s13, 2
      // Predicated region
      $region13: #{tpu_custom_call.1} parent=5 // pred_check
        %p97 = pneg %p96
      $region14: #{tpu_custom_call.1} parent=5 // pred_check_branch
        %99 = sbr.rel (%p97) target = $region16
      $region15: #{tpu_custom_call.1} parent=5 // pred_region
        // Predicated region
        $region17: #{tpu_custom_call.1} parent=15 // pred_check
          %p100 = pneg %p47
        $region18: #{tpu_custom_call.1} parent=15 // pred_check_branch
          %102 = sbr.rel (%p100) target = $region20
        $region19: #{tpu_custom_call.1} parent=15 // pred_region
          %s103 = sand.u32 %s37, 1
          %s104 = scalar_lea.sflag [#allocation3], %s103
          %s105 = sand.u32 %s37, 1
          %s106 = smul.addr %s105, 13
          %s107 = scalar_lea.vmem [#allocation2], %s106
          %s108 = smul.u32 13, %s21
          %s110 = ssub.s32 208, 208
          %111 = vsyncadd %s104, %s110
          %s112 = smul.addr %s20, 13
          %s113 = sadd.s32 %s108, %s112
          %s114 = smul.addr %s113, 16
          %s115 = scalar_lea.hbm %s0, %s114
          %s117 = sshll.u32 %s107, 4
          %s118 = int_to_ptr.vmem [resolvable:$true] %s117
          %120 = dma.hbm_to_vmem [thread:$0]  %s115, 208, %s118, %s104
        $region20: #{tpu_custom_call.1} parent=15 // pred_fallthru
          _
      $region16: #{tpu_custom_call.1} parent=5 // pred_fallthru
        _
      %p121 = scmp.le.s32.totalorder 1, %s13
      %p122 = scmp.lt.s32.totalorder %s13, 3
      %p123 = pnand %p121, %p122
      %p124 = pneg %p123
      // Predicated region
      $region21: #{tpu_custom_call.1} parent=5 // pred_check
        _
      $region22: #{tpu_custom_call.1} parent=5 // pred_check_branch
        %126 = sbr.rel (%p123) target = $region24
      $region23: #{tpu_custom_call.1} parent=5 // pred_region
        %s127 = ssub.s32 %s13, 1
        %s128 = sand.u32 %s40, 1
        %s129 = scalar_lea.sflag [#allocation3], %s128
        %s130 = sand.u32 %s40, 1
        %s131 = smul.addr %s130, 13
        %s132 = scalar_lea.vmem [#allocation2], %s131
        // Predicated region
        $region25: #{tpu_custom_call.1} parent=23 // pred_check
          %p133 = pneg %p53
        $region26: #{tpu_custom_call.1} parent=23 // pred_check_branch
          %135 = sbr.rel (%p133) target = $region28
        $region27: #{tpu_custom_call.1} parent=23 // pred_region
          %136 = dma.done %s129, 208
        $region28: #{tpu_custom_call.1} parent=23 // pred_fallthru
          _
        %s137 = sand.u32 %s40, 1
        %s138 = scalar_lea.sflag [#allocation3], %s137
        %s139 = sand.u32 %s40, 1
        %s140 = smul.addr %s139, 13
        %s141 = scalar_lea.vmem [#allocation2], %s140
        %p142 = pneg %p53
        %p143 = pneg %p50
        %p144 = pneg %p81
        %p145 = pneg %p78
        %s146 = sand.u32 %s68, 1
        %s147 = scalar_lea.sflag [#allocation4], %s146
        %s148 = sand.u32 %s68, 1
        %s149 = smul.addr %s148, 26
        %s150 = scalar_lea.vmem [#allocation5], %s149
        %s151 = smul.u32 13, %s23
        %s152 = smul.u32 13, %s23
        %v153 = vld [vmem:[%s132] sm:$0xff]
        %v154 = vld [vmem:[%s132 + $0x8] sm:$0x1f]
        %v157 = vlaneseq
        %v158 = vshrl.u32 %v157, 7
        %v159 = vsub.s32 0, %v158
        %v160 = vrot.slane %v153, %v159
        %v161 = vlaneseq
        %v162 = vshrl.u32 %v161, 7
        %v163 = vsub.s32 1, %v162
        %v164 = vrot.slane %v153, %v163
        %v165 = vlaneseq
        %v166 = vshrl.u32 %v165, 7
        %v167 = vsub.s32 2, %v166
        %v168 = vrot.slane %v153, %v167
        %v169 = vlaneseq
        %v170 = vshrl.u32 %v169, 7
        %v171 = vsub.s32 3, %v170
        %v172 = vrot.slane %v153, %v171
        %v173 = vlaneseq
        %v174 = vshrl.u32 %v173, 7
        %v175 = vsub.s32 4, %v174
        %v176 = vrot.slane %v153, %v175
        %v177 = vlaneseq
        %v178 = vshrl.u32 %v177, 7
        %v179 = vsub.s32 5, %v178
        %v180 = vrot.slane %v153, %v179
        %v181 = vlaneseq
        %v182 = vshrl.u32 %v181, 7
        %v183 = vsub.s32 6, %v182
        %v184 = vrot.slane %v153, %v183
        %v185 = vlaneseq
        %v186 = vshrl.u32 %v185, 7
        %v187 = vsub.s32 7, %v186
        %v188 = vrot.slane %v153, %v187
        %v189 = vlaneseq
        %v190 = vshrl.u32 %v189, 7
        %v191 = vsub.s32 0, %v190
        %v192 = vrot.slane %v154, %v191
        %v193 = vlaneseq
        %v194 = vshrl.u32 %v193, 7
        %v195 = vsub.s32 1, %v194
        %v196 = vrot.slane %v154, %v195
        %v197 = vlaneseq
        %v198 = vshrl.u32 %v197, 7
        %v199 = vsub.s32 2, %v198
        %v200 = vrot.slane %v154, %v199
        %v201 = vlaneseq
        %v202 = vshrl.u32 %v201, 7
        %v203 = vsub.s32 3, %v202
        %v204 = vrot.slane %v154, %v203
        %v205 = vlaneseq
        %v206 = vshrl.u32 %v205, 7
        %v207 = vsub.s32 4, %v206
        %v208 = vrot.slane %v154, %v207
        %v209 = vcombine.low %v160, %v164
        %v210 = vcombine.low %v168, %v172
        %v212 = vunpack.c.l.s4 1983009808
        %v213 = vunpack.c.0.s8 %v212
        %v214 = vlaneseq
        %v215 = vshrl.u32 %v214, 7
        %v216 = vsub.s32 %v213, %v215
        %v217 = vrot.slane %v209, %v216
        %v219 = vunpack.c.l.s4 1983009808
        %v220 = vunpack.c.0.s8 %v219
        %v221 = vlaneseq
        %v222 = vshrl.u32 %v221, 7
        %v223 = vsub.s32 %v220, %v222
        %v224 = vrot.slane %v210, %v223
        %v225 = vcombine.low %v217, %v224
        %v226 = vcombine.low %v176, %v180
        %v227 = vcombine.low %v184, %v188
        %v229 = vunpack.c.l.s4 1983009808
        %v230 = vunpack.c.0.s8 %v229
        %v231 = vlaneseq
        %v232 = vshrl.u32 %v231, 7
        %v233 = vsub.s32 %v230, %v232
        %v234 = vrot.slane %v226, %v233
        %v236 = vunpack.c.l.s4 1983009808
        %v237 = vunpack.c.0.s8 %v236
        %v238 = vlaneseq
        %v239 = vshrl.u32 %v238, 7
        %v240 = vsub.s32 %v237, %v239
        %v241 = vrot.slane %v227, %v240
        %v242 = vcombine.low %v234, %v241
        %v243 = vcombine.low %v192, %v196
        %v244 = vcombine.low %v200, %v204
        %v246 = vunpack.c.l.s4 1983009808
        %v247 = vunpack.c.0.s8 %v246
        %v248 = vlaneseq
        %v249 = vshrl.u32 %v248, 7
        %v250 = vsub.s32 %v247, %v249
        %v251 = vrot.slane %v243, %v250
        %v253 = vunpack.c.l.s4 1983009808
        %v254 = vunpack.c.0.s8 %v253
        %v255 = vlaneseq
        %v256 = vshrl.u32 %v255, 7
        %v257 = vsub.s32 %v254, %v256
        %v258 = vrot.slane %v244, %v257
        %v259 = vcombine.low %v251, %v258
        %v261 = vunpack.c.l.s4 1983009808
        %v262 = vunpack.c.0.s8 %v261
        %v263 = vlaneseq
        %v264 = vshrl.u32 %v263, 7
        %v265 = vsub.s32 %v262, %v264
        %v266 = vrot.slane %v208, %v265
        %271 = vst [vmem:[%s150] sm:$0xff] %v225
        %272 = vst [vmem:[%s150 + $0x8] sm:$0xff] %v242
        %273 = vst [vmem:[%s150 + $0x10] sm:$0xff] %v259
        %vm274 = vcmask 517120
        %275 = vst.msk [vmem:[%s150 + $0x18] sm:$0x3] %vm274, %v266
        %s276 = sand.u32 %s68, 1
        %s277 = scalar_lea.sflag [#allocation4], %s276
        %s278 = sand.u32 %s68, 1
        %s279 = smul.addr %s278, 26
        %s280 = scalar_lea.vmem [#allocation5], %s279
        // Predicated region
        $region29: #{tpu_custom_call.1} parent=23 // pred_check
          %p281 = pneg %p78
        $region30: #{tpu_custom_call.1} parent=23 // pred_check_branch
          %283 = sbr.rel (%p281) target = $region32
        $region31: #{tpu_custom_call.1} parent=23 // pred_region
          %s284 = smul.u32 13, %s23
          %s286 = ssub.s32 416, 416
          %287 = vsyncadd %s277, %s286
          %s288 = smul.addr %s22, 13
          %s289 = sadd.s32 %s284, %s288
          %s290 = smul.addr %s289, 32
          %s291 = scalar_lea.hbm %s1, %s290
          %s293 = sshll.u32 %s280, 4
          %s294 = int_to_ptr.vmem [resolvable:$true] %s293
          %296 = dma.vmem_to_hbm [thread:$0]  %s294, 416, %s291, %s277
        $region32: #{tpu_custom_call.1} parent=23 // pred_fallthru
          _
      $region24: #{tpu_custom_call.1} parent=5 // pred_fallthru
        _
      %p297 = scmp.le.s32.totalorder 2, %s13
      // Predicated region
      $region33: #{tpu_custom_call.1} parent=5 // pred_check
        %p298 = pneg %p297
      $region34: #{tpu_custom_call.1} parent=5 // pred_check_branch
        %300 = sbr.rel (%p298) target = $region36
      $region35: #{tpu_custom_call.1} parent=5 // pred_region
        %s301 = ssub.s32 %s13, 2
        // Predicated region
        $region37: #{tpu_custom_call.1} parent=35 // pred_check
          %p302 = pneg %p84
        $region38: #{tpu_custom_call.1} parent=35 // pred_check_branch
          %304 = sbr.rel (%p302) target = $region40
        $region39: #{tpu_custom_call.1} parent=35 // pred_region
          %s305 = sand.u32 %s69, 1
          %s306 = scalar_lea.sflag [#allocation4], %s305
          %s307 = sand.u32 %s69, 1
          %s308 = smul.addr %s307, 26
          %s309 = scalar_lea.vmem [#allocation5], %s308
          %310 = dma.done %s306, 416
        $region40: #{tpu_custom_call.1} parent=35 // pred_fallthru
          _
      $region36: #{tpu_custom_call.1} parent=5 // pred_fallthru
        _
    $region6: #{tpu_custom_call.1} parent=1 // loop_footer
      %s17 = sadd.s32 1, %s13
    $region7: #{tpu_custom_call.1} parent=1 // loop_footer_branch
      %12 = sbr.rel target = $region3
    $region8: #{tpu_custom_call.1} parent=1 // loop_exit
      _
    %311 = vsyncpa [#allocation3], 1
    %s312 = scalar_lea.sflag [#allocation3], 1
    %313 = vsyncpa %s312, 1
    %314 = vsyncpa [#allocation4], 1
    %s315 = scalar_lea.sflag [#allocation4], 1
    %316 = vsyncpa %s315, 1

</llo_original>
